<compile_context>
chip_gen: v5e
topology: v5e:2x2
jax: 0.10.0
libtpu: 0.0.40
codegen_flags: <defaults>
</compile_context>

<pallas_src>
import jax
import jax.numpy as jnp
from jax.experimental import pallas as pl
from jax.experimental.pallas import tpu as pltpu

_LANE = 128                       # TPU lane width
_SUBLANE = 8                      # f32 sublane height
_VMEM_BUDGET = 28 * 1024 * 1024   # per-call VMEM plan target (fits v5e/v6e/v7x)
_TB_MAX = 512                     # max batch-tile rows
_TK_MAX = 4096                    # K tile for the huge-K fallback
_MIN_TB_FULL_K = 64               # below this, full-K residency is not worth it


def _round_up(x: int, m: int) -> int:
    return (x + m - 1) // m * m


def _cdiv(a: int, b: int) -> int:
    return (a + b - 1) // b


def _largest_tile_divisor(k_pad: int, tk_max: int) -> int:
    """Largest 128-multiple divisor of k_pad that is <= tk_max (always >= 128)."""
    units = k_pad // _LANE
    best = 1
    for d in range(1, units + 1):
        if units % d == 0 and d * _LANE <= tk_max:
            best = d
    return best * _LANE


# ---------------------------------------------------------------------------
# Kernels
# ---------------------------------------------------------------------------
def _linear_kernel_full_k(x_ref, w_ref, b_ref, o_ref):
    """Whole K resident: one MXU dot per batch tile, bias fused into the store."""
    o_ref[...] = (
        jnp.dot(x_ref[...].astype(w_ref.dtype), w_ref[...],
                preferred_element_type=jnp.float32)
        + b_ref[...]
    )


def _linear_kernel_k_tiled(x_ref, w_ref, b_ref, o_ref):
    """Huge-K fallback: accumulate straight into the VMEM-resident f32 output."""
    @pl.when(pl.program_id(1) == 0)
    def _():
        o_ref[...] = jnp.broadcast_to(b_ref[...], o_ref.shape)

    o_ref[...] += jnp.dot(x_ref[...].astype(w_ref.dtype), w_ref[...],
                          preferred_element_type=jnp.float32)


# ---------------------------------------------------------------------------
# One-time parameter preparation (NOT per forward pass)
# ---------------------------------------------------------------------------
def prepare_linear_params(weight, bias, compute_dtype=jnp.bfloat16):
    """Takes PyTorch-layout params:
        weight: (num_classes, in_features) f32
        bias:   (num_classes,)             f32
    Returns:
        w_padded: (K_pad, N_pad) compute_dtype  -- transposed, zero-padded
        b_padded: (1, N_pad)     f32            -- zero-padded
        num_classes, in_features
    """
    num_classes, in_features = weight.shape
    k_pad = _round_up(in_features, _LANE)
    n_pad = _round_up(max(num_classes, _LANE), _LANE)   # keep at 128 for few classes

    w_t = jnp.zeros((k_pad, n_pad), compute_dtype)
    w_t = w_t.at[:in_features, :num_classes].set(weight.T.astype(compute_dtype))

    b_p = jnp.zeros((1, n_pad), jnp.float32)
    b_p = b_p.at[0, :num_classes].set(bias.astype(jnp.float32))
    return w_t, b_p, num_classes, in_features


# ---------------------------------------------------------------------------
# Tile planning
# ---------------------------------------------------------------------------
def _plan_tiles(b: int, k_pad: int, n_pad: int, w_itemsize: int):
    """Pick (tb, nb, tk, nk) under the portable VMEM budget."""
    def tb_cap_for(tk):
        fixed = 2 * tk * n_pad * w_itemsize + n_pad * 4   # weight dbuf + bias
        per_row = 2 * (tk * 4 + n_pad * 4)                # f32 x + f32 out, dbuf
        cap = max((_VMEM_BUDGET - fixed) // per_row, _SUBLANE)
        return max(_SUBLANE, min(_TB_MAX, cap // _SUBLANE * _SUBLANE))

    # Preferred: whole K resident in VMEM (weight DMA'd once, no reduction axis).
    tk, nk = k_pad, 1
    tb_cap = tb_cap_for(tk)
    if tb_cap < _MIN_TB_FULL_K and k_pad > _TK_MAX:
        # Huge K: tile the reduction instead (tk divides k_pad -> no per-call pad).
        tk = _largest_tile_divisor(k_pad, _TK_MAX)
        nk = k_pad // tk
        tb_cap = tb_cap_for(tk)

    n_tiles = _cdiv(b, tb_cap)
    if b >= 32 and n_tiles < 2:
        n_tiles = 2                                       # v7x: feed both TensorCores
    if n_tiles == 1:
        tb = b                                            # block == full dim: no pad
    else:
        tb = _round_up(_cdiv(b, n_tiles), _SUBLANE)       # minimal batch padding
    nb = _cdiv(b, tb)
    return tb, nb, tk, nk


# ---------------------------------------------------------------------------
# Forward pass
# ---------------------------------------------------------------------------
def linear_classifier_forward(x, w_padded, b_padded, num_classes, in_features):
    """
    Args:
        x:        (b, 3, H, W) float32 image (NCHW; flattened like torch .view(b,-1))
        w_padded: (K_pad, N_pad) bf16 from prepare_linear_params
        b_padded: (1, N_pad)     f32  from prepare_linear_params
    Returns:
        (b, num_classes) float32 logits
    """
    b = x.shape[0]
    assert x.shape[1] * x.shape[2] * x.shape[3] == in_features
    k_pad, n_pad = w_padded.shape
    w_itemsize = jnp.dtype(w_padded.dtype).itemsize

    # Raw f32 activations stream straight into the kernel (cast to bf16 per tile
    # inside) -- no wrapper-side cast/pad copy of x on the common path.
    x_flat = x.reshape(b, -1)
    if in_features != k_pad:
        # Rare (in_features not a 128 multiple): zero-pad K so padded columns can
        # never contaminate real logits (matching weight rows are already zero).
        x_flat = jnp.pad(x_flat, ((0, 0), (0, k_pad - in_features)))

    tb, nb, tk, nk = _plan_tiles(b, k_pad, n_pad, w_itemsize)
    b_out = nb * tb     # >= b; any overhanging rows are garbage and sliced off

    cost = pl.CostEstimate(
        flops=2 * b_out * k_pad * n_pad,
        transcendentals=0,
        bytes_accessed=(b * k_pad * 4                                   # x (f32)
                        + k_pad * n_pad * w_itemsize * (1 if nk == 1 else nb)
                        + b_out * n_pad * 4),                           # logits
    )
    vmem_bytes = (2 * tb * tk * 4 + 2 * tk * n_pad * w_itemsize
                  + 2 * tb * n_pad * 4 + n_pad * 4)
    vmem_limit = int(min(max(2 * vmem_bytes, 16 << 20), 48 << 20))

    if nk == 1:
        kernel = _linear_kernel_full_k
        grid = (nb,)
        in_specs = [
            pl.BlockSpec((tb, tk), lambda i: (i, 0)),       # x batch tile (f32)
            pl.BlockSpec((tk, n_pad), lambda i: (0, 0)),    # weight: resident, 1 DMA
            pl.BlockSpec((1, n_pad), lambda i: (0, 0)),     # bias: resident
        ]
        out_specs = pl.BlockSpec((tb, n_pad), lambda i: (i, 0))
        dims = ("parallel",)
    else:
        kernel = _linear_kernel_k_tiled
        grid = (nb, nk)
        in_specs = [
            pl.BlockSpec((tb, tk), lambda i, k: (i, k)),
            pl.BlockSpec((tk, n_pad), lambda i, k: (k, 0)),
            pl.BlockSpec((1, n_pad), lambda i, k: (0, 0)),
        ]
        out_specs = pl.BlockSpec((tb, n_pad), lambda i, k: (i, 0))
        dims = ("parallel", "arbitrary")

    out = pl.pallas_call(
        kernel,
        out_shape=jax.ShapeDtypeStruct((b_out, n_pad), jnp.float32),
        grid_spec=pltpu.PrefetchScalarGridSpec(
            num_scalar_prefetch=0,
            grid=grid,
            in_specs=in_specs,
            out_specs=out_specs,
        ),
        compiler_params=pltpu.CompilerParams(
            dimension_semantics=dims,
            vmem_limit_bytes=vmem_limit,
        ),
        cost_estimate=cost,
    )(x_flat, w_padded, b_padded)

    # Strip batch / class padding.
    return out[:b, :num_classes]


def init_linear_classifier_params(key, h=64, w=64, num_classes=6):
    """Deterministic init mimicking nn.Linear default (uniform +-1/sqrt(fan_in))."""
    in_features = h * w * 3
    k_w, k_b = jax.random.split(key)
    bound = 1.0 / jnp.sqrt(jnp.float32(in_features))
    weight = jax.random.uniform(
        k_w, (num_classes, in_features), jnp.float32, minval=-bound, maxval=bound
    )
    bias = jax.random.uniform(
        k_b, (num_classes,), jnp.float32, minval=-bound, maxval=bound
    )
    return weight, bias


if __name__ == "__main__":
    # Small shapes consistent with the module: b=2, 3 channels, 16x16 image.
    B, C, H, W, NUM_CLASSES = 2, 3, 16, 16, 6

    key = jax.random.PRNGKey(0)
    k_x, k_p = jax.random.split(key)

    x = jax.random.normal(k_x, (B, C, H, W), dtype=jnp.float32)
    weight, bias = init_linear_classifier_params(k_p, h=H, w=W, num_classes=NUM_CLASSES)

    # One-time parameter prep (pre-transposed / padded / bf16).
    w_p, b_p, nc, kf = prepare_linear_params(weight, bias)

    logits = linear_classifier_forward(x, w_p, b_p, nc, kf)
    logits = jax.block_until_ready(logits)
    assert logits.shape == (B, NUM_CLASSES)

    # Reference with matching bf16 rounding of x and W (kernel accumulates in f32).
    x_bf = x.reshape(B, -1).astype(jnp.bfloat16).astype(jnp.float32)
    w_bf = weight.astype(jnp.bfloat16).astype(jnp.float32)
    ref_bf = x_bf @ w_bf.T + bias
    assert jnp.allclose(logits, ref_bf, atol=2e-3, rtol=2e-3)

    # Sanity check against the full-f32 reference (bf16 input-rounding budget).
    ref_f32 = x.reshape(B, -1) @ weight.T + bias
    assert jnp.allclose(logits, ref_f32, atol=5e-2, rtol=5e-2)

    print("KERNEL_OK")
</pallas_src>

<mosaic_0001>
module attributes {stable_mosaic.version = 11 : i64} {
  func.func @_linear_kernel_full_k(%arg0: i32, %arg1: memref<2x768xf32, #tpu.memory_space<vmem>>, %arg2: memref<768x128xbf16, #tpu.memory_space<vmem>>, %arg3: memref<1x128xf32, #tpu.memory_space<vmem>>, %arg4: memref<2x128xf32, #tpu.memory_space<vmem>>) attributes {dimension_semantics = [#tpu.dimension_semantics<parallel>], iteration_bounds = array<i64: 1>, scalar_prefetch = 0 : i64, scratch_operands = 0 : i64, tpu.core_type = #tpu.core_type<tc>, window_params = [{transform_indices = @transform_0, window_bounds = array<i64: 2, 768>}, {pipeline_mode = #tpu.pipeline_mode<synchronous>, transform_indices = @transform_1, window_bounds = array<i64: 768, 128>}, {pipeline_mode = #tpu.pipeline_mode<synchronous>, transform_indices = @transform_2, window_bounds = array<i64: 1, 128>}, {transform_indices = @transform_3, window_bounds = array<i64: 2, 128>}]} {
    %c0 = arith.constant 0 : index
    %c0_0 = arith.constant 0 : index
    %0 = vector.load %arg1[%c0, %c0_0] : memref<2x768xf32, #tpu.memory_space<vmem>>, vector<2x768xf32>
    %1 = arith.truncf %0 : vector<2x768xf32> to vector<2x768xbf16>
    %c0_1 = arith.constant 0 : index
    %c0_2 = arith.constant 0 : index
    %2 = vector.load %arg2[%c0_1, %c0_2] : memref<768x128xbf16, #tpu.memory_space<vmem>>, vector<768x128xbf16>
    %cst = arith.constant dense<0.000000e+00> : vector<2x128xf32>
    %3 = tpu.matmul %1, %2, %cst {dimension_numbers = #tpu.dot_dimension_numbers<[1], [0], [0], [1], [0, 0, 1, 1], [], []>} : vector<2x768xbf16>, vector<768x128xbf16>, vector<2x128xf32> -> vector<2x128xf32>
    %c0_3 = arith.constant 0 : index
    %c0_4 = arith.constant 0 : index
    %4 = vector.load %arg3[%c0_3, %c0_4] : memref<1x128xf32, #tpu.memory_space<vmem>>, vector<1x128xf32>
    %5 = vector.broadcast %4 : vector<1x128xf32> to vector<2x128xf32>
    %6 = arith.addf %3, %5 : vector<2x128xf32>
    %c0_5 = arith.constant 0 : index
    %c0_6 = arith.constant 0 : index
    %7 = vector.load %arg4[%c0_5, %c0_6] : memref<2x128xf32, #tpu.memory_space<vmem>>, vector<2x128xf32>
    tpu.vector_store %arg4[%c0_5, %c0_6], %6 {strides = array<i32>} : memref<2x128xf32, #tpu.memory_space<vmem>>, vector<2x128xf32>,
    return
  }
  func.func @transform_0(%arg0: i32) -> (i32, i32) {
    %c0_i32 = arith.constant 0 : i32
    %c0_i32_0 = arith.constant 0 : i32
    return %arg0, %c0_i32 : i32, i32
  }
  func.func @transform_1(%arg0: i32) -> (i32, i32) {
    %c0_i32 = arith.constant 0 : i32
    %c0_i32_0 = arith.constant 0 : i32
    %c0_i32_1 = arith.constant 0 : i32
    return %c0_i32, %c0_i32_0 : i32, i32
  }
  func.func @transform_2(%arg0: i32) -> (i32, i32) {
    %c0_i32 = arith.constant 0 : i32
    %c0_i32_0 = arith.constant 0 : i32
    %c0_i32_1 = arith.constant 0 : i32
    return %c0_i32, %c0_i32_0 : i32, i32
  }
  func.func @transform_3(%arg0: i32) -> (i32, i32) {
    %c0_i32 = arith.constant 0 : i32
    %c0_i32_0 = arith.constant 0 : i32
    return %arg0, %c0_i32 : i32, i32
  }
}

</mosaic_0001>

<llo_original>
// kernel: tpu_custom_call.1
$region0: #{tpu_custom_call.1}
  #allocation0 [shape = 'u32[]', space=smem, size = 0x4, offset = 0x4, fixed_abs, tag = 'smem constant byte address 0x4 - core index']
  #allocation1 [shape = 'u32[72,128]{1,0:T(1,128)}', space=vmem, size = 0x9000, scoped, tag = 'internal scratch']
  %s0 = inlined_call_operand.hbm [shape: f32[2,768], index: 0, kind: input, shape index: {}]
  %s1 = inlined_call_operand.hbm [shape: bf16[768,128], index: 1, kind: input, shape index: {}]
  %s2 = inlined_call_operand.vmem [shape: f32[1,128], index: 2, kind: input, shape index: {}]
  %s3 = inlined_call_operand.hbm [shape: f32[2,128], index: 3, kind: output, shape index: {}]
  %s4 = sld [smem:[#allocation0]]
  $region30: #{tpu_custom_call.1} parent=0
    _
  %s6 = ssub.s32 1, %s4
  %s7 = scalar_select 0, %s6, %s4
  $region1: #{tpu_custom_call.1} parent=0
    #allocation2 [shape = 'u8[6144]{0}', space=vmem, size = 0x1800, scoped, tag = 'input window, operand 0, single buffered']
    #allocation3 [shape = 's32[1]{0}', space=sflag, size = 0x4, scoped, tag = 'scoped memory for tpu_custom_call.1']
    #allocation4 [shape = 's32[1]{0}', space=sflag, size = 0x4, scoped, tag = 'scoped memory for tpu_custom_call.1']
    #allocation5 [shape = 'u8[196608]{0}', space=vmem, size = 0x30000, scoped, tag = 'input window, operand 1, single buffered']
    #allocation6 [shape = 's32[1]{0}', space=sflag, size = 0x4, scoped, tag = 'scoped memory for tpu_custom_call.1']
    #allocation7 [shape = 'u8[1024]{0}', space=vmem, size = 0x400, scoped, tag = 'output window, operand 0, single buffered']
    %8 = vsyncpa [#allocation3], 0
    %9 = vsyncpa [#allocation6], 0
    %10 = vsyncpa [#allocation4], 0
    // Predicated region
    $region2: #{tpu_custom_call.1} parent=1 // pred_check
      _
    $region3: #{tpu_custom_call.1} parent=1 // pred_check_branch
      %12 = sbr.rel (0) target = $region5
    $region4: #{tpu_custom_call.1} parent=1 // pred_region
      %14 = vsyncadd [#allocation3], 0
      %s16 = sshll.u32 %s0, 4
      %s17 = int_to_ptr.hbm [resolvable:$true] %s16
      %s18 = sshll.u32 [#allocation2], 4
      %s19 = int_to_ptr.vmem [resolvable:$true] %s18
      %21 = dma.hbm_to_vmem [thread:$0]  %s17, 192, %s19, [#allocation3]
    $region5: #{tpu_custom_call.1} parent=1 // pred_fallthru
      _
    // Predicated region
    $region6: #{tpu_custom_call.1} parent=1 // pred_check
      _
    $region7: #{tpu_custom_call.1} parent=1 // pred_check_branch
      %23 = sbr.rel (0) target = $region9
    $region8: #{tpu_custom_call.1} parent=1 // pred_region
      %25 = vsyncadd [#allocation6], 0
      %s26 = sshll.u32 %s1, 4
      %s27 = int_to_ptr.hbm [resolvable:$true] %s26
      %s28 = sshll.u32 [#allocation5], 4
      %s29 = int_to_ptr.vmem [resolvable:$true] %s28
      %34 = dma.hbm_to_vmem [thread:$0]  %s27, 6144, %s29, [#allocation6], 64, 64, 4
    $region9: #{tpu_custom_call.1} parent=1 // pred_fallthru
      _
    // Predicated region
    $region10: #{tpu_custom_call.1} parent=1 // pred_check
      _
    $region11: #{tpu_custom_call.1} parent=1 // pred_check_branch
      %36 = sbr.rel (0) target = $region13
    $region12: #{tpu_custom_call.1} parent=1 // pred_region
      _
    $region13: #{tpu_custom_call.1} parent=1 // pred_fallthru
      _
    // Predicated region
    $region14: #{tpu_custom_call.1} parent=1 // pred_check
      _
    $region15: #{tpu_custom_call.1} parent=1 // pred_check_branch
      %38 = sbr.rel (0) target = $region17
    $region16: #{tpu_custom_call.1} parent=1 // pred_region
      %40 = dma.done [#allocation3], 192
    $region17: #{tpu_custom_call.1} parent=1 // pred_fallthru
      _
    // Predicated region
    $region18: #{tpu_custom_call.1} parent=1 // pred_check
      _
    $region19: #{tpu_custom_call.1} parent=1 // pred_check_branch
      %42 = sbr.rel (0) target = $region21
    $region20: #{tpu_custom_call.1} parent=1 // pred_region
      %44 = dma.done [#allocation6], 6144
    $region21: #{tpu_custom_call.1} parent=1 // pred_fallthru
      _
    %v45 = vld [vmem:[#allocation2] sm:$0xff]
    %v46 = vld [vmem:[#allocation2 + $0x8] sm:$0xf]
    %49 = vst [vmem:[#allocation1] ss:$4 sm:$0xff] %v45
    %s50 = scalar_lea.vmem [#allocation1], 32
    %51 = vst [vmem:[%s50] ss:$4 sm:$0xff] %v46
    %v52 = vld.sshfl [vmem:[#allocation1] sm:$0xff pattern:$0x73625140]
    %v53 = vld.sshfl [vmem:[#allocation1 + $0x8] sm:$0xff pattern:$0x73625140]
    %v54 = vld.sshfl [vmem:[#allocation1 + $0x10] sm:$0xff pattern:$0x73625140]
    %v55 = vld.sshfl [vmem:[#allocation1 + $0x18] sm:$0xff pattern:$0x73625140]
    %v56 = vld.sshfl [vmem:[#allocation1 + $0x20] sm:$0xff pattern:$0x73625140]
    %v57 = vld.sshfl [vmem:[#allocation1 + $0x28] sm:$0xff pattern:$0x73625140]
    %v64 = vpack.c.bf16 %v52, %v52
    %v65 = vpack.c.bf16 %v53, %v53
    %v66 = vpack.c.bf16 %v54, %v54
    %v67 = vpack.c.bf16 %v55, %v55
    %v68 = vpack.c.bf16 %v56, %v56
    %v69 = vpack.c.bf16 %v57, %v57
    %v70 = vld [vmem:[#allocation5] sm:$0xf]
    %v71 = vld [vmem:[#allocation5 + $0x4] sm:$0xf]
    %v72 = vld [vmem:[#allocation5 + $0x8] sm:$0xf]
    %v73 = vld [vmem:[#allocation5 + $0xc] sm:$0xf]
    %v74 = vld [vmem:[#allocation5 + $0x10] sm:$0xf]
    %v75 = vld [vmem:[#allocation5 + $0x14] sm:$0xf]
    %v76 = vld [vmem:[#allocation5 + $0x18] sm:$0xf]
    %v77 = vld [vmem:[#allocation5 + $0x1c] sm:$0xf]
    %v78 = vld [vmem:[#allocation5 + $0x20] sm:$0xf]
    %v79 = vld [vmem:[#allocation5 + $0x24] sm:$0xf]
    %v80 = vld [vmem:[#allocation5 + $0x28] sm:$0xf]
    %v81 = vld [vmem:[#allocation5 + $0x2c] sm:$0xf]
    %v82 = vld [vmem:[#allocation5 + $0x30] sm:$0xf]
    %v83 = vld [vmem:[#allocation5 + $0x34] sm:$0xf]
    %v84 = vld [vmem:[#allocation5 + $0x38] sm:$0xf]
    %v85 = vld [vmem:[#allocation5 + $0x3c] sm:$0xf]
    %v86 = vld [vmem:[#allocation5 + $0x40] sm:$0xf]
    %v87 = vld [vmem:[#allocation5 + $0x44] sm:$0xf]
    %v88 = vld [vmem:[#allocation5 + $0x48] sm:$0xf]
    %v89 = vld [vmem:[#allocation5 + $0x4c] sm:$0xf]
    %v90 = vld [vmem:[#allocation5 + $0x50] sm:$0xf]
    %v91 = vld [vmem:[#allocation5 + $0x54] sm:$0xf]
    %v92 = vld [vmem:[#allocation5 + $0x58] sm:$0xf]
    %v93 = vld [vmem:[#allocation5 + $0x5c] sm:$0xf]
    %v94 = vld [vmem:[#allocation5 + $0x60] sm:$0xf]
    %v95 = vld [vmem:[#allocation5 + $0x64] sm:$0xf]
    %v96 = vld [vmem:[#allocation5 + $0x68] sm:$0xf]
    %v97 = vld [vmem:[#allocation5 + $0x6c] sm:$0xf]
    %v98 = vld [vmem:[#allocation5 + $0x70] sm:$0xf]
    %v99 = vld [vmem:[#allocation5 + $0x74] sm:$0xf]
    %v100 = vld [vmem:[#allocation5 + $0x78] sm:$0xf]
    %v101 = vld [vmem:[#allocation5 + $0x7c] sm:$0xf]
    %v102 = vld [vmem:[#allocation5 + $0x80] sm:$0xf]
    %v103 = vld [vmem:[#allocation5 + $0x84] sm:$0xf]
    %v104 = vld [vmem:[#allocation5 + $0x88] sm:$0xf]
    %v105 = vld [vmem:[#allocation5 + $0x8c] sm:$0xf]
    %v106 = vld [vmem:[#allocation5 + $0x90] sm:$0xf]
    %v107 = vld [vmem:[#allocation5 + $0x94] sm:$0xf]
    %v108 = vld [vmem:[#allocation5 + $0x98] sm:$0xf]
    %v109 = vld [vmem:[#allocation5 + $0x9c] sm:$0xf]
    %v110 = vld [vmem:[#allocation5 + $0xa0] sm:$0xf]
    %v111 = vld [vmem:[#allocation5 + $0xa4] sm:$0xf]
    %v112 = vld [vmem:[#allocation5 + $0xa8] sm:$0xf]
    %v113 = vld [vmem:[#allocation5 + $0xac] sm:$0xf]
    %v114 = vld [vmem:[#allocation5 + $0xb0] sm:$0xf]
    %v115 = vld [vmem:[#allocation5 + $0xb4] sm:$0xf]
    %v116 = vld [vmem:[#allocation5 + $0xb8] sm:$0xf]
    %v117 = vld [vmem:[#allocation5 + $0xbc] sm:$0xf]
    %v118 = vld [vmem:[#allocation5 + $0xc0] sm:$0xf]
    %v119 = vld [vmem:[#allocation5 + $0xc4] sm:$0xf]
    %v120 = vld [vmem:[#allocation5 + $0xc8] sm:$0xf]
    %v121 = vld [vmem:[#allocation5 + $0xcc] sm:$0xf]
    %v122 = vld [vmem:[#allocation5 + $0xd0] sm:$0xf]
    %v123 = vld [vmem:[#allocation5 + $0xd4] sm:$0xf]
    %v124 = vld [vmem:[#allocation5 + $0xd8] sm:$0xf]
    %v125 = vld [vmem:[#allocation5 + $0xdc] sm:$0xf]
    %v126 = vld [vmem:[#allocation5 + $0xe0] sm:$0xf]
    %v127 = vld [vmem:[#allocation5 + $0xe4] sm:$0xf]
    %v128 = vld [vmem:[#allocation5 + $0xe8] sm:$0xf]
    %v129 = vld [vmem:[#allocation5 + $0xec] sm:$0xf]
    %v130 = vld [vmem:[#allocation5 + $0xf0] sm:$0xf]
    %v131 = vld [vmem:[#allocation5 + $0xf4] sm:$0xf]
    %v132 = vld [vmem:[#allocation5 + $0xf8] sm:$0xf]
    %v133 = vld [vmem:[#allocation5 + $0xfc] sm:$0xf]
    %v134 = vld [vmem:[#allocation5 + $0x100] sm:$0xf]
    %v135 = vld [vmem:[#allocation5 + $0x104] sm:$0xf]
    %v136 = vld [vmem:[#allocation5 + $0x108] sm:$0xf]
    %v137 = vld [vmem:[#allocation5 + $0x10c] sm:$0xf]
    %v138 = vld [vmem:[#allocation5 + $0x110] sm:$0xf]
    %v139 = vld [vmem:[#allocation5 + $0x114] sm:$0xf]
    %v140 = vld [vmem:[#allocation5 + $0x118] sm:$0xf]
    %v141 = vld [vmem:[#allocation5 + $0x11c] sm:$0xf]
    %v142 = vld [vmem:[#allocation5 + $0x120] sm:$0xf]
    %v143 = vld [vmem:[#allocation5 + $0x124] sm:$0xf]
    %v144 = vld [vmem:[#allocation5 + $0x128] sm:$0xf]
    %v145 = vld [vmem:[#allocation5 + $0x12c] sm:$0xf]
    %v146 = vld [vmem:[#allocation5 + $0x130] sm:$0xf]
    %v147 = vld [vmem:[#allocation5 + $0x134] sm:$0xf]
    %v148 = vld [vmem:[#allocation5 + $0x138] sm:$0xf]
    %v149 = vld [vmem:[#allocation5 + $0x13c] sm:$0xf]
    %v150 = vld [vmem:[#allocation5 + $0x140] sm:$0xf]
    %v151 = vld [vmem:[#allocation5 + $0x144] sm:$0xf]
    %v152 = vld [vmem:[#allocation5 + $0x148] sm:$0xf]
    %v153 = vld [vmem:[#allocation5 + $0x14c] sm:$0xf]
    %v154 = vld [vmem:[#allocation5 + $0x150] sm:$0xf]
    %v155 = vld [vmem:[#allocation5 + $0x154] sm:$0xf]
    %v156 = vld [vmem:[#allocation5 + $0x158] sm:$0xf]
    %v157 = vld [vmem:[#allocation5 + $0x15c] sm:$0xf]
    %v158 = vld [vmem:[#allocation5 + $0x160] sm:$0xf]
    %v159 = vld [vmem:[#allocation5 + $0x164] sm:$0xf]
    %v160 = vld [vmem:[#allocation5 + $0x168] sm:$0xf]
    %v161 = vld [vmem:[#allocation5 + $0x16c] sm:$0xf]
    %v162 = vld [vmem:[#allocation5 + $0x170] sm:$0xf]
    %v163 = vld [vmem:[#allocation5 + $0x174] sm:$0xf]
    %v164 = vld [vmem:[#allocation5 + $0x178] sm:$0xf]
    %v165 = vld [vmem:[#allocation5 + $0x17c] sm:$0xf]
    %v166 = vld [vmem:[%s2] sm:$0x1]
    %v168 = vperm.slane %v166, 0
    %v266 = vunpack.c.l.b16 %v70
    %v267 = vunpack.c.l.b16 %v71
    %v268 = vunpack.c.l.b16 %v72
    %v269 = vunpack.c.l.b16 %v73
    %v270 = vunpack.c.l.b16 %v74
    %v271 = vunpack.c.l.b16 %v75
    %v272 = vunpack.c.l.b16 %v76
    %v273 = vunpack.c.l.b16 %v77
    %v274 = vunpack.c.l.b16 %v78
    %v275 = vunpack.c.l.b16 %v79
    %v276 = vunpack.c.l.b16 %v80
    %v277 = vunpack.c.l.b16 %v81
    %v278 = vunpack.c.l.b16 %v82
    %v279 = vunpack.c.l.b16 %v83
    %v280 = vunpack.c.l.b16 %v84
    %v281 = vunpack.c.l.b16 %v85
    %v282 = vunpack.c.l.b16 %v86
    %v283 = vunpack.c.l.b16 %v87
    %v284 = vunpack.c.l.b16 %v88
    %v285 = vunpack.c.l.b16 %v89
    %v286 = vunpack.c.l.b16 %v90
    %v287 = vunpack.c.l.b16 %v91
    %v288 = vunpack.c.l.b16 %v92
    %v289 = vunpack.c.l.b16 %v93
    %v290 = vunpack.c.l.b16 %v94
    %v291 = vunpack.c.l.b16 %v95
    %v292 = vunpack.c.l.b16 %v96
    %v293 = vunpack.c.l.b16 %v97
    %v294 = vunpack.c.l.b16 %v98
    %v295 = vunpack.c.l.b16 %v99
    %v296 = vunpack.c.l.b16 %v100
    %v297 = vunpack.c.l.b16 %v101
    %v298 = vunpack.c.l.b16 %v102
    %v299 = vunpack.c.l.b16 %v103
    %v300 = vunpack.c.l.b16 %v104
    %v301 = vunpack.c.l.b16 %v105
    %v302 = vunpack.c.l.b16 %v106
    %v303 = vunpack.c.l.b16 %v107
    %v304 = vunpack.c.l.b16 %v108
    %v305 = vunpack.c.l.b16 %v109
    %v306 = vunpack.c.l.b16 %v110
    %v307 = vunpack.c.l.b16 %v111
    %v308 = vunpack.c.l.b16 %v112
    %v309 = vunpack.c.l.b16 %v113
    %v310 = vunpack.c.l.b16 %v114
    %v311 = vunpack.c.l.b16 %v115
    %v312 = vunpack.c.l.b16 %v116
    %v313 = vunpack.c.l.b16 %v117
    %v314 = vunpack.c.l.b16 %v118
    %v315 = vunpack.c.l.b16 %v119
    %v316 = vunpack.c.l.b16 %v120
    %v317 = vunpack.c.l.b16 %v121
    %v318 = vunpack.c.l.b16 %v122
    %v319 = vunpack.c.l.b16 %v123
    %v320 = vunpack.c.l.b16 %v124
    %v321 = vunpack.c.l.b16 %v125
    %v322 = vunpack.c.l.b16 %v126
    %v323 = vunpack.c.l.b16 %v127
    %v324 = vunpack.c.l.b16 %v128
    %v325 = vunpack.c.l.b16 %v129
    %v326 = vunpack.c.l.b16 %v130
    %v327 = vunpack.c.l.b16 %v131
    %v328 = vunpack.c.l.b16 %v132
    %v329 = vunpack.c.l.b16 %v133
    %v330 = vunpack.c.l.b16 %v134
    %v331 = vunpack.c.l.b16 %v135
    %v332 = vunpack.c.l.b16 %v136
    %v333 = vunpack.c.l.b16 %v137
    %v334 = vunpack.c.l.b16 %v138
    %v335 = vunpack.c.l.b16 %v139
    %v336 = vunpack.c.l.b16 %v140
    %v337 = vunpack.c.l.b16 %v141
    %v338 = vunpack.c.l.b16 %v142
    %v339 = vunpack.c.l.b16 %v143
    %v340 = vunpack.c.l.b16 %v144
    %v341 = vunpack.c.l.b16 %v145
    %v342 = vunpack.c.l.b16 %v146
    %v343 = vunpack.c.l.b16 %v147
    %v344 = vunpack.c.l.b16 %v148
    %v345 = vunpack.c.l.b16 %v149
    %v346 = vunpack.c.l.b16 %v150
    %v347 = vunpack.c.l.b16 %v151
    %v348 = vunpack.c.l.b16 %v152
    %v349 = vunpack.c.l.b16 %v153
    %v350 = vunpack.c.l.b16 %v154
    %v351 = vunpack.c.l.b16 %v155
    %v352 = vunpack.c.l.b16 %v156
    %v353 = vunpack.c.l.b16 %v157
    %v354 = vunpack.c.l.b16 %v158
    %v355 = vunpack.c.l.b16 %v159
    %v356 = vunpack.c.l.b16 %v160
    %v357 = vunpack.c.l.b16 %v161
    %v358 = vunpack.c.l.b16 %v162
    %v359 = vunpack.c.l.b16 %v163
    %v360 = vunpack.c.l.b16 %v164
    %v361 = vunpack.c.l.b16 %v165
    %v362 = vpack.c.b16 %v267, %v266
    %v363 = vpack.c.b16 %v269, %v268
    %v364 = vpack.c.b16 %v271, %v270
    %v365 = vpack.c.b16 %v273, %v272
    %v366 = vpack.c.b16 %v275, %v274
    %v367 = vpack.c.b16 %v277, %v276
    %v368 = vpack.c.b16 %v279, %v278
    %v369 = vpack.c.b16 %v281, %v280
    %v370 = vpack.c.b16 %v283, %v282
    %v371 = vpack.c.b16 %v285, %v284
    %v372 = vpack.c.b16 %v287, %v286
    %v373 = vpack.c.b16 %v289, %v288
    %v374 = vpack.c.b16 %v291, %v290
    %v375 = vpack.c.b16 %v293, %v292
    %v376 = vpack.c.b16 %v295, %v294
    %v377 = vpack.c.b16 %v297, %v296
    %v378 = vpack.c.b16 %v299, %v298
    %v379 = vpack.c.b16 %v301, %v300
    %v380 = vpack.c.b16 %v303, %v302
    %v381 = vpack.c.b16 %v305, %v304
    %v382 = vpack.c.b16 %v307, %v306
    %v383 = vpack.c.b16 %v309, %v308
    %v384 = vpack.c.b16 %v311, %v310
    %v385 = vpack.c.b16 %v313, %v312
    %v386 = vpack.c.b16 %v315, %v314
    %v387 = vpack.c.b16 %v317, %v316
    %v388 = vpack.c.b16 %v319, %v318
    %v389 = vpack.c.b16 %v321, %v320
    %v390 = vpack.c.b16 %v323, %v322
    %v391 = vpack.c.b16 %v325, %v324
    %v392 = vpack.c.b16 %v327, %v326
    %v393 = vpack.c.b16 %v329, %v328
    %v394 = vpack.c.b16 %v331, %v330
    %v395 = vpack.c.b16 %v333, %v332
    %v396 = vpack.c.b16 %v335, %v334
    %v397 = vpack.c.b16 %v337, %v336
    %v398 = vpack.c.b16 %v339, %v338
    %v399 = vpack.c.b16 %v341, %v340
    %v400 = vpack.c.b16 %v343, %v342
    %v401 = vpack.c.b16 %v345, %v344
    %v402 = vpack.c.b16 %v347, %v346
    %v403 = vpack.c.b16 %v349, %v348
    %v404 = vpack.c.b16 %v351, %v350
    %v405 = vpack.c.b16 %v353, %v352
    %v406 = vpack.c.b16 %v355, %v354
    %v407 = vpack.c.b16 %v357, %v356
    %v408 = vpack.c.b16 %v359, %v358
    %v409 = vpack.c.b16 %v361, %v360
    %458 = vmatpush.bf16.msra.mxu0 %v369
    %459 = vmatpush.bf16.msra.mxu0 %v368
    %460 = vmatpush.bf16.msra.mxu0 %v367
    %461 = vmatpush.bf16.msra.mxu0 %v366
    %462 = vmatpush.bf16.msra.mxu0 %v365
    %463 = vmatpush.bf16.msra.mxu0 %v364
    %464 = vmatpush.bf16.msra.mxu0 %v363
    %465 = vmatpush.bf16.msra.mxu0 %v362
    %466 = vmatmul.bf16.gmra.mxu0 %v64
    %v467 = vpop.f32.mrf.mxu0
    %v468 = vadd.f32 %v168, %v467
    %v469 = vpop.f32.mrf.mxu0
    %470 = vdwg.mxu0
    %471 = vmatpush.bf16.msra.mxu0 %v377
    %472 = vmatpush.bf16.msra.mxu0 %v376
    %473 = vmatpush.bf16.msra.mxu0 %v375
    %474 = vmatpush.bf16.msra.mxu0 %v374
    %475 = vmatpush.bf16.msra.mxu0 %v373
    %476 = vmatpush.bf16.msra.mxu0 %v372
    %477 = vmatpush.bf16.msra.mxu0 %v371
    %478 = vmatpush.bf16.msra.mxu0 %v370
    %479 = vmatmul.bf16.gmra.mxu0 %v65
    %v480 = vpop.f32.mrf.mxu0
    %v481 = vadd.f32 %v468, %v480
    %v482 = vpop.f32.mrf.mxu0
    %483 = vdwg.mxu0
    %484 = vmatpush.bf16.msra.mxu0 %v385
    %485 = vmatpush.bf16.msra.mxu0 %v384
    %486 = vmatpush.bf16.msra.mxu0 %v383
    %487 = vmatpush.bf16.msra.mxu0 %v382
    %488 = vmatpush.bf16.msra.mxu0 %v381
    %489 = vmatpush.bf16.msra.mxu0 %v380
    %490 = vmatpush.bf16.msra.mxu0 %v379
    %491 = vmatpush.bf16.msra.mxu0 %v378
    %492 = vmatmul.bf16.gmra.mxu0 %v66
    %v493 = vpop.f32.mrf.mxu0
    %v494 = vadd.f32 %v481, %v493
    %v495 = vpop.f32.mrf.mxu0
    %496 = vdwg.mxu0
    %497 = vmatpush.bf16.msra.mxu0 %v393
    %498 = vmatpush.bf16.msra.mxu0 %v392
    %499 = vmatpush.bf16.msra.mxu0 %v391
    %500 = vmatpush.bf16.msra.mxu0 %v390
    %501 = vmatpush.bf16.msra.mxu0 %v389
    %502 = vmatpush.bf16.msra.mxu0 %v388
    %503 = vmatpush.bf16.msra.mxu0 %v387
    %504 = vmatpush.bf16.msra.mxu0 %v386
    %505 = vmatmul.bf16.gmra.mxu0 %v67
    %v506 = vpop.f32.mrf.mxu0
    %v507 = vadd.f32 %v494, %v506
    %v508 = vpop.f32.mrf.mxu0
    %509 = vdwg.mxu0
    %510 = vmatpush.bf16.msra.mxu0 %v401
    %511 = vmatpush.bf16.msra.mxu0 %v400
    %512 = vmatpush.bf16.msra.mxu0 %v399
    %513 = vmatpush.bf16.msra.mxu0 %v398
    %514 = vmatpush.bf16.msra.mxu0 %v397
    %515 = vmatpush.bf16.msra.mxu0 %v396
    %516 = vmatpush.bf16.msra.mxu0 %v395
    %517 = vmatpush.bf16.msra.mxu0 %v394
    %518 = vmatmul.bf16.gmra.mxu0 %v68
    %v519 = vpop.f32.mrf.mxu0
    %v520 = vadd.f32 %v507, %v519
    %v521 = vpop.f32.mrf.mxu0
    %522 = vdwg.mxu0
    %523 = vmatpush.bf16.msra.mxu0 %v409
    %524 = vmatpush.bf16.msra.mxu0 %v408
    %525 = vmatpush.bf16.msra.mxu0 %v407
    %526 = vmatpush.bf16.msra.mxu0 %v406
    %527 = vmatpush.bf16.msra.mxu0 %v405
    %528 = vmatpush.bf16.msra.mxu0 %v404
    %529 = vmatpush.bf16.msra.mxu0 %v403
    %530 = vmatpush.bf16.msra.mxu0 %v402
    %531 = vmatmul.bf16.gmra.mxu0 %v69
    %v532 = vpop.f32.mrf.mxu0
    %v533 = vadd.f32 %v520, %v532
    %v534 = vpop.f32.mrf.mxu0
    %535 = vdwg.mxu0
    %536 = vst [vmem:[#allocation7] sm:$0x3] %v533
    // Predicated region
    $region22: #{tpu_custom_call.1} parent=1 // pred_check
      _
    $region23: #{tpu_custom_call.1} parent=1 // pred_check_branch
      %538 = sbr.rel (0) target = $region25
    $region24: #{tpu_custom_call.1} parent=1 // pred_region
      %540 = vsyncadd [#allocation4], 0
      %s542 = sshll.u32 [#allocation7], 4
      %s543 = int_to_ptr.vmem [resolvable:$true] %s542
      %s544 = sshll.u32 %s3, 4
      %s545 = int_to_ptr.hbm [resolvable:$true] %s544
      %547 = dma.vmem_to_hbm [thread:$0]  %s543, 32, %s545, [#allocation4]
    $region25: #{tpu_custom_call.1} parent=1 // pred_fallthru
      _
    // Predicated region
    $region26: #{tpu_custom_call.1} parent=1 // pred_check
      _
    $region27: #{tpu_custom_call.1} parent=1 // pred_check_branch
      %549 = sbr.rel (0) target = $region29
    $region28: #{tpu_custom_call.1} parent=1 // pred_region
      %551 = dma.done [#allocation4], 32
    $region29: #{tpu_custom_call.1} parent=1 // pred_fallthru
      _
    %552 = vsyncpa [#allocation3], 1
    %553 = vsyncpa [#allocation6], 1
    %554 = vsyncpa [#allocation4], 1

</llo_original>
